<compile_context>
chip_gen: v7x
topology: tpu7x:2x2x1
jax: 0.10.0
libtpu: 0.0.40
codegen_flags: <defaults>
</compile_context>

<pallas_src>
import functools

import jax
import jax.numpy as jnp
from jax.experimental import pallas as pl
from jax.experimental.pallas import tpu as pltpu


def _focal_kernel(x_ref, y_ref, alpha_ref, loss_ref, cnt_ref,
                  loss_acc, cnt_acc, *, gamma: float, ignore_index: int, hw: int):
    ti = pl.program_id(1)

    @pl.when(ti == 0)
    def _():
        loss_acc[...] = jnp.zeros_like(loss_acc)
        cnt_acc[...] = jnp.zeros_like(cnt_acc)

    x = x_ref[...].astype(jnp.float32)          # (C, TILE): classes on sublanes
    y = y_ref[...]                              # (1, TILE) int32
    c, tile = x.shape

    # valid = real column (not grid-tail padding) AND label != ignore_index
    valid = y != ignore_index                   # (1, TILE) bool
    if hw % tile != 0:                          # static: only emit mask if needed
        col = ti * tile + jax.lax.broadcasted_iota(jnp.int32, (1, tile), 1)
        valid = jnp.logical_and(valid, col < hw)
    y_safe = jnp.where(valid, y, 0)

    # per-pixel log_softmax over the class (sublane) axis
    m = jnp.max(x, axis=0, keepdims=True)       # (1, TILE)
    z = x - m
    lse = jnp.log(jnp.sum(jnp.exp(z), axis=0, keepdims=True))
    log_p = z - lse                             # (C, TILE)

    # one-hot gather of log_p[y] and alpha[y] (TPU-friendly gather)
    cls = jax.lax.broadcasted_iota(jnp.int32, (c, tile), 0)
    onehot = (cls == y_safe).astype(jnp.float32)                # (C, TILE)
    log_pt = jnp.sum(log_p * onehot, axis=0, keepdims=True)     # (1, TILE)
    alpha_y = jnp.sum(alpha_ref[...] * onehot, axis=0, keepdims=True)

    ce = -alpha_y * log_pt                      # NLLLoss(weight=alpha, red='none')
    pt = jnp.exp(log_pt)
    omp = 1.0 - pt
    g = float(gamma)
    if g == 0.0:
        focal = jnp.ones_like(pt)               # skip the term entirely
    elif g.is_integer() and 0.0 < g <= 4.0:
        focal = omp                             # repeated multiply (no pow/NaN hazard)
        for _ in range(int(g) - 1):
            focal = focal * omp
    else:
        focal = jnp.power(jnp.maximum(omp, 0.0), g)

    loss_acc[...] += jnp.where(valid, focal * ce, 0.0)
    cnt_acc[...] += valid.astype(jnp.float32)

    @pl.when(ti == pl.num_programs(1) - 1)
    def _():
        loss_ref[...] = loss_acc[...]
        cnt_ref[...] = cnt_acc[...]


def focal_loss_pallas(x, y, alpha=None, *, gamma=0.0, reduction="mean",
                      ignore_index=-100, tile_hw=1024):
    """x: (B, C, *spatial) float; y: (B, *spatial) int; alpha: (C,) float or None."""
    # TODO(synk): reduction='none' in the PyTorch module returns a dynamically
    # sized (filtered) vector; only 'mean' and 'sum' are supported here.
    assert reduction in ("mean", "sum")
    b, c = x.shape[0], x.shape[1]
    hw = 1
    for d in x.shape[2:]:
        hw *= d

    # zero-copy views: no NCHW->NHWC transpose, no wrapper-side dtype upcast.
    x3 = x.reshape(b, c, hw)
    y3 = y.reshape(b, 1, hw).astype(jnp.int32)

    if alpha is None:
        alpha = jnp.ones((c,), dtype=jnp.float32)
    alpha2d = jnp.asarray(alpha, dtype=jnp.float32).reshape(c, 1)

    # only tiny spatial extents are padded (keeps block <= array dim); large
    # non-aligned tails are masked in-kernel instead of copied.
    if hw < 128:
        pad = 128 - hw
        x3 = jnp.pad(x3, ((0, 0), (0, 0), (0, pad)))
        y3 = jnp.pad(y3, ((0, 0), (0, 0), (0, pad)), constant_values=ignore_index)
        hw = 128

    # tile selection: multiple of 128, <= hw, capped so the double-buffered
    # x tile stays well under the scoped-VMEM limit on every generation.
    x_bytes = jnp.dtype(x.dtype).itemsize
    vmem_budget = 6 * 1024 * 1024
    cap = max(128, (vmem_budget // (2 * c * x_bytes)) // 128 * 128)
    tile = min(int(tile_hw), cap, (hw // 128) * 128)
    tile = max(128, (tile // 128) * 128)
    n_tiles = pl.cdiv(hw, tile)

    kernel = functools.partial(_focal_kernel, gamma=float(gamma),
                               ignore_index=int(ignore_index), hw=hw)

    loss_part, cnt_part = pl.pallas_call(
        kernel,
        out_shape=(jax.ShapeDtypeStruct((b, 1, tile), jnp.float32),
                   jax.ShapeDtypeStruct((b, 1, tile), jnp.float32)),
        grid_spec=pltpu.PrefetchScalarGridSpec(
            num_scalar_prefetch=0,
            grid=(b, n_tiles),
            in_specs=[
                pl.BlockSpec((None, c, tile), lambda bi, ti: (bi, 0, ti)),   # logits
                pl.BlockSpec((None, 1, tile), lambda bi, ti: (bi, 0, ti)),   # labels
                pl.BlockSpec((c, 1), lambda bi, ti: (0, 0)),                 # alpha
            ],
            out_specs=[
                pl.BlockSpec((None, 1, tile), lambda bi, ti: (bi, 0, 0)),    # loss partial
                pl.BlockSpec((None, 1, tile), lambda bi, ti: (bi, 0, 0)),    # count partial
            ],
            scratch_shapes=[pltpu.VMEM((1, tile), jnp.float32),
                            pltpu.VMEM((1, tile), jnp.float32)],
        ),
        compiler_params=pltpu.CompilerParams(
            dimension_semantics=("parallel", "arbitrary"),
            vmem_limit_bytes=32 * 1024 * 1024),
    )(x3, y3, alpha2d)

    total = jnp.sum(loss_part)
    count = jnp.sum(cnt_part)
    if reduction == "mean":
        return jnp.where(count > 0, total / count, jnp.float32(0.0))
    return total


def focal_loss_ref(x, y, alpha, *, gamma, reduction, ignore_index):
    """Pure-JAX reference mirroring the PyTorch module."""
    c = x.shape[1]
    xf = jnp.moveaxis(x, 1, -1).reshape(-1, c).astype(jnp.float32)
    yf = y.reshape(-1).astype(jnp.int32)
    valid = yf != ignore_index
    y_safe = jnp.where(valid, yf, 0)
    log_p = jax.nn.log_softmax(xf, axis=-1)
    log_pt = jnp.take_along_axis(log_p, y_safe[:, None], axis=-1)[:, 0]
    alpha_y = alpha[y_safe]
    ce = -alpha_y * log_pt
    pt = jnp.exp(log_pt)
    loss = jnp.where(valid, (1.0 - pt) ** gamma * ce, 0.0)
    cnt = jnp.sum(valid.astype(jnp.float32))
    if reduction == "mean":
        return jnp.where(cnt > 0, jnp.sum(loss) / cnt, 0.0)
    return jnp.sum(loss)


if __name__ == "__main__":
    key = jax.random.PRNGKey(0)
    kx, ky, kig, kx2, ky2 = jax.random.split(key, 5)

    B, C, H, W = 2, 4, 16, 16
    gamma = 2.0
    ignore_index = -100

    x = jax.random.normal(kx, (B, C, H, W), dtype=jnp.float32)
    y = jax.random.randint(ky, (B, H, W), 0, C, dtype=jnp.int32)
    ignore_mask = jax.random.bernoulli(kig, 0.1, (B, H, W))
    y = jnp.where(ignore_mask, ignore_index, y)
    alpha = jnp.array([0.5, 1.0, 1.5, 2.0], dtype=jnp.float32)

    # mean reduction, gamma=2 (integer fast path)
    out = focal_loss_pallas(x, y, alpha, gamma=gamma, reduction="mean",
                            ignore_index=ignore_index)
    out = jax.block_until_ready(out)
    ref = focal_loss_ref(x, y, alpha, gamma=gamma, reduction="mean",
                         ignore_index=ignore_index)
    assert jnp.allclose(out, ref, rtol=2e-5, atol=2e-5), (out, ref)

    # sum reduction on the same data
    out_s = focal_loss_pallas(x, y, alpha, gamma=gamma, reduction="sum",
                              ignore_index=ignore_index)
    ref_s = focal_loss_ref(x, y, alpha, gamma=gamma, reduction="sum",
                           ignore_index=ignore_index)
    assert jnp.allclose(out_s, ref_s, rtol=2e-5, atol=2e-5), (out_s, ref_s)

    # bf16 logits (narrow HBM read, in-kernel upcast), non-128-aligned spatial
    # (exercises the in-kernel tail mask), alpha=None, gamma=0 fast path.
    H2, W2 = 2, 12 * 6   # hw = 144, not a multiple of 128
    x2 = jax.random.normal(kx2, (B, C, H2, W2), dtype=jnp.bfloat16)
    y2 = jax.random.randint(ky2, (B, H2, W2), 0, C, dtype=jnp.int32)
    out2 = focal_loss_pallas(x2, y2, None, gamma=0.0, reduction="mean",
                             ignore_index=ignore_index)
    out2 = jax.block_until_ready(out2)
    ref2 = focal_loss_ref(x2, y2, jnp.ones((C,), jnp.float32), gamma=0.0,
                          reduction="mean", ignore_index=ignore_index)
    assert jnp.allclose(out2, ref2, rtol=2e-3, atol=2e-3), (out2, ref2)

    print("KERNEL_OK")
</pallas_src>

<mosaic_0001>
module attributes {stable_mosaic.version = 11 : i64} {
  func.func @_focal_kernel(%arg0: i32, %arg1: i32, %arg2: memref<1x4x256xf32, #tpu.memory_space<vmem>>, %arg3: memref<1x1x256xi32, #tpu.memory_space<vmem>>, %arg4: memref<4x1xf32, #tpu.memory_space<vmem>>, %arg5: memref<1x1x256xf32, #tpu.memory_space<vmem>>, %arg6: memref<1x1x256xf32, #tpu.memory_space<vmem>>, %arg7: memref<1x256xf32, #tpu.memory_space<vmem>>, %arg8: memref<1x256xf32, #tpu.memory_space<vmem>>) attributes {dimension_semantics = [#tpu.dimension_semantics<parallel>, #tpu.dimension_semantics<arbitrary>], iteration_bounds = array<i64: 2, 1>, scalar_prefetch = 0 : i64, scratch_operands = 2 : i64, tpu.core_type = #tpu.core_type<tc>, window_params = [{transform_indices = @transform_0, window_bounds = array<i64: 1, 4, 256>}, {transform_indices = @transform_1, window_bounds = array<i64: 1, 1, 256>}, {pipeline_mode = #tpu.pipeline_mode<synchronous>, transform_indices = @transform_2, window_bounds = array<i64: 4, 1>}, {transform_indices = @transform_3, window_bounds = array<i64: 1, 1, 256>}, {transform_indices = @transform_4, window_bounds = array<i64: 1, 1, 256>}]} {
    %c0_i32 = arith.constant 0 : i32
    %0 = arith.cmpi eq, %arg1, %c0_i32 : i32
    %1 = arith.extui %0 : i1 to i32
    %c0_i32_0 = arith.constant 0 : i32
    %2 = arith.cmpi ne, %1, %c0_i32_0 : i32
    scf.if %2 {
      %cst_25 = arith.constant 0.000000e+00 : f32
      %55 = vector.broadcast %cst_25 : f32 to vector<1x256xf32>
      %c0_26 = arith.constant 0 : index
      %c0_27 = arith.constant 0 : index
      %56 = vector.load %arg7[%c0_26, %c0_27] : memref<1x256xf32, #tpu.memory_space<vmem>>, vector<1x256xf32>
      tpu.vector_store %arg7[%c0_26, %c0_27], %55 {strides = array<i32>} : memref<1x256xf32, #tpu.memory_space<vmem>>, vector<1x256xf32>,
      %cst_28 = arith.constant 0.000000e+00 : f32
      %57 = vector.broadcast %cst_28 : f32 to vector<1x256xf32>
      %c0_29 = arith.constant 0 : index
      %c0_30 = arith.constant 0 : index
      %58 = vector.load %arg8[%c0_29, %c0_30] : memref<1x256xf32, #tpu.memory_space<vmem>>, vector<1x256xf32>
      tpu.vector_store %arg8[%c0_29, %c0_30], %57 {strides = array<i32>} : memref<1x256xf32, #tpu.memory_space<vmem>>, vector<1x256xf32>,
    } else {
    }
    %c0 = arith.constant 0 : index
    %c0_1 = arith.constant 0 : index
    %c0_2 = arith.constant 0 : index
    %3 = vector.load %arg2[%c0, %c0_1, %c0_2] : memref<1x4x256xf32, #tpu.memory_space<vmem>>, vector<1x4x256xf32>
    %4 = vector.shape_cast %3 : vector<1x4x256xf32> to vector<4x256xf32>
    %c0_3 = arith.constant 0 : index
    %c0_4 = arith.constant 0 : index
    %c0_5 = arith.constant 0 : index
    %5 = vector.load %arg3[%c0_3, %c0_4, %c0_5] : memref<1x1x256xi32, #tpu.memory_space<vmem>>, vector<1x1x256xi32>
    %6 = vector.shape_cast %5 : vector<1x1x256xi32> to vector<1x256xi32>
    %c-100_i32 = arith.constant -100 : i32
    %7 = vector.broadcast %c-100_i32 : i32 to vector<1x256xi32>
    %8 = arith.cmpi ne, %6, %7 : vector<1x256xi32>
    %c0_i32_6 = arith.constant 0 : i32
    %9 = vector.broadcast %c0_i32_6 : i32 to vector<1x256xi32>
    %10 = arith.select %8, %6, %9 : vector<1x256xi1>, vector<1x256xi32>
    %cst = arith.constant dense<0xFF800000> : vector<256xf32>
    %11 = vector.multi_reduction <maximumf>, %4, %cst [0] : vector<4x256xf32> to vector<256xf32>
    %12 = vector.shape_cast %11 : vector<256xf32> to vector<1x256xf32>
    %13 = vector.broadcast %12 : vector<1x256xf32> to vector<4x256xf32>
    %14 = arith.subf %4, %13 : vector<4x256xf32>
    %15 = math.exp %14 : vector<4x256xf32>
    %cst_7 = arith.constant dense<0.000000e+00> : vector<256xf32>
    %16 = vector.multi_reduction <add>, %15, %cst_7 [0] : vector<4x256xf32> to vector<256xf32>
    %17 = vector.shape_cast %16 : vector<256xf32> to vector<1x256xf32>
    %18 = math.log %17 : vector<1x256xf32>
    %19 = vector.broadcast %18 : vector<1x256xf32> to vector<4x256xf32>
    %20 = arith.subf %14, %19 : vector<4x256xf32>
    %21 = tpu.iota {dimensions = array<i32: 0>} : vector<4x256xi32>
    %22 = vector.broadcast %10 : vector<1x256xi32> to vector<4x256xi32>
    %23 = arith.cmpi eq, %21, %22 : vector<4x256xi32>
    %24 = arith.extui %23 : vector<4x256xi1> to vector<4x256xi32>
    %25 = arith.sitofp %24 : vector<4x256xi32> to vector<4x256xf32>
    %26 = arith.mulf %20, %25 : vector<4x256xf32>
    %cst_8 = arith.constant dense<0.000000e+00> : vector<256xf32>
    %27 = vector.multi_reduction <add>, %26, %cst_8 [0] : vector<4x256xf32> to vector<256xf32>
    %28 = vector.shape_cast %27 : vector<256xf32> to vector<1x256xf32>
    %c0_9 = arith.constant 0 : index
    %c0_10 = arith.constant 0 : index
    %29 = vector.load %arg4[%c0_9, %c0_10] : memref<4x1xf32, #tpu.memory_space<vmem>>, vector<4x1xf32>
    %30 = vector.broadcast %29 : vector<4x1xf32> to vector<4x256xf32>
    %31 = arith.mulf %30, %25 : vector<4x256xf32>
    %cst_11 = arith.constant dense<0.000000e+00> : vector<256xf32>
    %32 = vector.multi_reduction <add>, %31, %cst_11 [0] : vector<4x256xf32> to vector<256xf32>
    %33 = vector.shape_cast %32 : vector<256xf32> to vector<1x256xf32>
    %cst_12 = arith.constant 0.000000e+00 : f32
    %34 = vector.broadcast %cst_12 : f32 to vector<1x256xf32>
    %35 = arith.subf %34, %33 : vector<1x256xf32>
    %36 = arith.mulf %35, %28 : vector<1x256xf32>
    %37 = math.exp %28 : vector<1x256xf32>
    %cst_13 = arith.constant 1.000000e+00 : f32
    %38 = vector.broadcast %cst_13 : f32 to vector<1x256xf32>
    %39 = arith.subf %38, %37 : vector<1x256xf32>
    %40 = arith.mulf %39, %39 : vector<1x256xf32>
    %c0_14 = arith.constant 0 : index
    %c0_15 = arith.constant 0 : index
    %41 = vector.load %arg7[%c0_14, %c0_15] : memref<1x256xf32, #tpu.memory_space<vmem>>, vector<1x256xf32>
    %42 = arith.mulf %40, %36 : vector<1x256xf32>
    %cst_16 = arith.constant 0.000000e+00 : f32
    %43 = vector.broadcast %cst_16 : f32 to vector<1x256xf32>
    %44 = arith.select %8, %42, %43 : vector<1x256xi1>, vector<1x256xf32>
    %45 = arith.addf %41, %44 : vector<1x256xf32>
    %c0_17 = arith.constant 0 : index
    %c0_18 = arith.constant 0 : index
    %46 = vector.load %arg7[%c0_17, %c0_18] : memref<1x256xf32, #tpu.memory_space<vmem>>, vector<1x256xf32>
    tpu.vector_store %arg7[%c0_17, %c0_18], %45 {strides = array<i32>} : memref<1x256xf32, #tpu.memory_space<vmem>>, vector<1x256xf32>,
    %c0_19 = arith.constant 0 : index
    %c0_20 = arith.constant 0 : index
    %47 = vector.load %arg8[%c0_19, %c0_20] : memref<1x256xf32, #tpu.memory_space<vmem>>, vector<1x256xf32>
    %48 = arith.extui %8 : vector<1x256xi1> to vector<1x256xi32>
    %49 = arith.sitofp %48 : vector<1x256xi32> to vector<1x256xf32>
    %50 = arith.addf %47, %49 : vector<1x256xf32>
    %c0_21 = arith.constant 0 : index
    %c0_22 = arith.constant 0 : index
    %51 = vector.load %arg8[%c0_21, %c0_22] : memref<1x256xf32, #tpu.memory_space<vmem>>, vector<1x256xf32>
    tpu.vector_store %arg8[%c0_21, %c0_22], %50 {strides = array<i32>} : memref<1x256xf32, #tpu.memory_space<vmem>>, vector<1x256xf32>,
    %c0_i32_23 = arith.constant 0 : i32
    %52 = arith.cmpi eq, %arg1, %c0_i32_23 : i32
    %53 = arith.extui %52 : i1 to i32
    %c0_i32_24 = arith.constant 0 : i32
    %54 = arith.cmpi ne, %53, %c0_i32_24 : i32
    scf.if %54 {
      %c0_25 = arith.constant 0 : index
      %c0_26 = arith.constant 0 : index
      %55 = vector.load %arg7[%c0_25, %c0_26] : memref<1x256xf32, #tpu.memory_space<vmem>>, vector<1x256xf32>
      %c0_27 = arith.constant 0 : index
      %c0_28 = arith.constant 0 : index
      %c0_29 = arith.constant 0 : index
      %56 = vector.load %arg5[%c0_27, %c0_28, %c0_29] : memref<1x1x256xf32, #tpu.memory_space<vmem>>, vector<1x1x256xf32>
      %57 = vector.shape_cast %56 : vector<1x1x256xf32> to vector<1x256xf32>
      %58 = vector.shape_cast %55 : vector<1x256xf32> to vector<1x1x256xf32>
      tpu.vector_store %arg5[%c0_27, %c0_28, %c0_29], %58 {strides = array<i32>} : memref<1x1x256xf32, #tpu.memory_space<vmem>>, vector<1x1x256xf32>,
      %c0_30 = arith.constant 0 : index
      %c0_31 = arith.constant 0 : index
      %59 = vector.load %arg8[%c0_30, %c0_31] : memref<1x256xf32, #tpu.memory_space<vmem>>, vector<1x256xf32>
      %c0_32 = arith.constant 0 : index
      %c0_33 = arith.constant 0 : index
      %c0_34 = arith.constant 0 : index
      %60 = vector.load %arg6[%c0_32, %c0_33, %c0_34] : memref<1x1x256xf32, #tpu.memory_space<vmem>>, vector<1x1x256xf32>
      %61 = vector.shape_cast %60 : vector<1x1x256xf32> to vector<1x256xf32>
      %62 = vector.shape_cast %59 : vector<1x256xf32> to vector<1x1x256xf32>
      tpu.vector_store %arg6[%c0_32, %c0_33, %c0_34], %62 {strides = array<i32>} : memref<1x1x256xf32, #tpu.memory_space<vmem>>, vector<1x1x256xf32>,
    } else {
    }
    return
  }
  func.func @transform_0(%arg0: i32, %arg1: i32) -> (i32, i32, i32) {
    %c0_i32 = arith.constant 0 : i32
    %c0_i32_0 = arith.constant 0 : i32
    return %arg0, %c0_i32, %arg1 : i32, i32, i32
  }
  func.func @transform_1(%arg0: i32, %arg1: i32) -> (i32, i32, i32) {
    %c0_i32 = arith.constant 0 : i32
    %c0_i32_0 = arith.constant 0 : i32
    return %arg0, %c0_i32, %arg1 : i32, i32, i32
  }
  func.func @transform_2(%arg0: i32, %arg1: i32) -> (i32, i32) {
    %c0_i32 = arith.constant 0 : i32
    %c0_i32_0 = arith.constant 0 : i32
    %c0_i32_1 = arith.constant 0 : i32
    return %c0_i32, %c0_i32_0 : i32, i32
  }
  func.func @transform_3(%arg0: i32, %arg1: i32) -> (i32, i32, i32) {
    %c0_i32 = arith.constant 0 : i32
    %c0_i32_0 = arith.constant 0 : i32
    %c0_i32_1 = arith.constant 0 : i32
    return %arg0, %c0_i32, %c0_i32_0 : i32, i32, i32
  }
  func.func @transform_4(%arg0: i32, %arg1: i32) -> (i32, i32, i32) {
    %c0_i32 = arith.constant 0 : i32
    %c0_i32_0 = arith.constant 0 : i32
    %c0_i32_1 = arith.constant 0 : i32
    return %arg0, %c0_i32, %c0_i32_0 : i32, i32, i32
  }
}

</mosaic_0001>

<llo_original>
// kernel: tpu_custom_call.1
$region0: #{tpu_custom_call.1}
  #allocation0 [shape = 'u32[]', space=smem, size = 0x4, offset = 0x4, fixed_abs, tag = 'smem constant byte address 0x4 - core index']
  #allocation1 [shape = 'u32[144,128]{1,0:T(1,128)}', space=vmem, size = 0x12000, scoped, tag = 'internal scratch']
  #allocation2 [shape = 'f32[1,256]{1,0:T(1,128)}', space=vmem, size = 0x400, scoped, tag = 'scratch operand']
  #allocation3 [shape = 'f32[1,256]{1,0:T(1,128)}', space=vmem, size = 0x400, scoped, tag = 'scratch operand']
  %s0 = inlined_call_operand.hbm [shape: f32[2,4,256], index: 0, kind: input, shape index: {}]
  %s1 = inlined_call_operand.vmem [shape: s32[2,1,256], index: 1, kind: input, shape index: {}]
  %s2 = inlined_call_operand.vmem [shape: f32[4,1], index: 2, kind: input, shape index: {}]
  %s3 = inlined_call_operand.hbm [shape: f32[2,1,256], index: 3, kind: output, shape index: {0}]
  %s4 = inlined_call_operand.hbm [shape: f32[2,1,256], index: 4, kind: output, shape index: {1}]
  %5 = xla_tuple %s3, %s4
  %s6 = sld [smem:[#allocation0]]
  $region65: #{tpu_custom_call.1} parent=0
    _
  %s8 = ssub.s32 1, %s6
  %s9 = scalar_select 0, %s8, %s6
  $region1: #{tpu_custom_call.1} parent=0
    #allocation4 [shape = 'u8[8192]{0}', space=vmem, size = 0x2000, scoped, tag = 'input window, operand 0']
    #allocation5 [shape = 's32[2]{0}', space=sflag, size = 0x8, scoped, tag = 'scoped memory for tpu_custom_call.1']
    #allocation6 [shape = 's32[2]{0}', space=sflag, size = 0x8, scoped, tag = 'scoped memory for tpu_custom_call.1']
    #allocation7 [shape = 'u8[2048]{0}', space=vmem, size = 0x800, scoped, tag = 'output window, operand 0']
    #allocation8 [shape = 'u8[2048]{0}', space=vmem, size = 0x800, scoped, tag = 'output window, operand 1']
    #allocation9 [shape = 's32[2]{0}', space=sflag, size = 0x8, scoped, tag = 'scoped memory for tpu_custom_call.1']
    %10 = vsyncpa [#allocation5], 0
    %s11 = scalar_lea.sflag [#allocation5], 1
    %12 = vsyncpa %s11, 0
    %13 = vsyncpa [#allocation6], 0
    %s14 = scalar_lea.sflag [#allocation6], 1
    %15 = vsyncpa %s14, 0
    %16 = vsyncpa [#allocation9], 0
    %s17 = scalar_lea.sflag [#allocation9], 1
    %18 = vsyncpa %s17, 0
    loop: start=0, step=1, limit=4
    $region2: #{tpu_custom_call.1} parent=1 // loop_pre_header
      _
    $region3: #{tpu_custom_call.1} parent=1 // loop_header
      %s20 = sphi 0, %s24
      %p21 = scmp.ge.s32.totalorder %s20, 4
      %s27 = sphi 0, %s39
      %s28 = sphi 0, %s35
      %s29 = sphi 0, %s27
      %s30 = sphi 0, %s28
      %s31 = sphi 0, %s29
      %s32 = sphi 0, %s30
      %s44 = sphi 0, %s46
      %s47 = sphi 0, %s44
      %s48 = sphi 0, %s47
      %s64 = sphi 0, %s48
      %s72 = sphi 0, %s74
      %s75 = sphi 0, %s72
      %s76 = sphi 0, %s75
      %s92 = sphi 0, %s76
      %s96 = sphi 0, %s96
      %s98 = sphi 0, %s96
      %s99 = sphi 0, %s98
      %s113 = sphi 0, %s99
      %s119 = sphi 0, %s121
      %s122 = sphi 0, %s119
      %s123 = sphi 0, %s122
      %s139 = sphi 0, %s123
      %s145 = sphi 0, %s147
      %s148 = sphi 0, %s145
      %s149 = sphi 0, %s148
      %s165 = sphi 0, %s149
    $region4: #{tpu_custom_call.1} parent=1 // loop_header_branch
      %23 = sbr.rel (%p21) target = $region8
    $region5: #{tpu_custom_call.1} parent=1 // loop_body
      %s25 = ssub.s32 %s20, 1
      %s26 = ssub.s32 %s20, 2
      %s33 = sadd.s32 1, %s28
      %p34 = scmp.ge.s32.totalorder %s33, 1
      %s35 = scalar_select %p34, 0, %s33
      %s36 = sadd.s32 1, %s27
      %s37 = scalar_select %p34, %s36, %s27
      %p38 = scmp.ge.s32.totalorder %s37, 2
      %s39 = scalar_select %p38, 0, %s37
      %s40 = ssub.s32 %s27, %s39
      %s41 = ssub.s32 %s28, %s35
      %s42 = sor.u32 %s40, %s41
      %p43 = scmp.eq.s32.totalorder %s42, 0
      %s45 = sadd.s32 %s44, 1
      %s46 = scalar_select %p43, %s44, %s45
      %p49 = pneg %p43
      %p50 = scmp.eq.s32.totalorder %s20, 1
      %p51 = por %p49, %p50
      %p52 = scmp.ne.s32.totalorder %s44, %s47
      %p53 = scmp.eq.s32.totalorder %s20, 0
      %p54 = por %p52, %p53
      %p55 = scmp.ne.s32.totalorder %s44, %s47
      %p56 = scmp.eq.s32.totalorder %s25, 1
      %p57 = por %p55, %p56
      %p58 = scmp.ne.s32.totalorder %s47, %s48
      %p59 = scmp.eq.s32.totalorder %s25, 0
      %p60 = por %p58, %p59
      %p61 = scmp.ne.s32.totalorder %s47, %s48
      %p62 = scmp.eq.s32.totalorder %s26, 1
      %p63 = por %p61, %p62
      %p65 = scmp.ne.s32.totalorder %s48, %s64
      %p66 = scmp.eq.s32.totalorder %s26, 0
      %p67 = por %p65, %p66
      %s68 = ssub.s32 %s27, %s39
      %s69 = ssub.s32 %s28, %s35
      %s70 = sor.u32 %s68, %s69
      %p71 = scmp.eq.s32.totalorder %s70, 0
      %s73 = sadd.s32 %s72, 1
      %s74 = scalar_select %p71, %s72, %s73
      %p77 = pneg %p71
      %p78 = scmp.eq.s32.totalorder %s20, 1
      %p79 = por %p77, %p78
      %p80 = scmp.ne.s32.totalorder %s72, %s75
      %p81 = scmp.eq.s32.totalorder %s20, 0
      %p82 = por %p80, %p81
      %p83 = scmp.ne.s32.totalorder %s72, %s75
      %p84 = scmp.eq.s32.totalorder %s25, 1
      %p85 = por %p83, %p84
      %p86 = scmp.ne.s32.totalorder %s75, %s76
      %p87 = scmp.eq.s32.totalorder %s25, 0
      %p88 = por %p86, %p87
      %p89 = scmp.ne.s32.totalorder %s75, %s76
      %p90 = scmp.eq.s32.totalorder %s26, 1
      %p91 = por %p89, %p90
      %p93 = scmp.ne.s32.totalorder %s76, %s92
      %p94 = scmp.eq.s32.totalorder %s26, 0
      %p95 = por %p93, %p94
      %s97 = sadd.s32 %s96, 1
      %p100 = scmp.eq.s32.totalorder %s20, 1
      %p101 = scmp.ne.s32.totalorder %s96, %s98
      %p102 = scmp.eq.s32.totalorder %s20, 0
      %p103 = por %p101, %p102
      %p104 = scmp.ne.s32.totalorder %s96, %s98
      %p105 = scmp.eq.s32.totalorder %s25, 1
      %p106 = por %p104, %p105
      %p107 = scmp.ne.s32.totalorder %s98, %s99
      %p108 = scmp.eq.s32.totalorder %s25, 0
      %p109 = por %p107, %p108
      %p110 = scmp.ne.s32.totalorder %s98, %s99
      %p111 = scmp.eq.s32.totalorder %s26, 1
      %p112 = por %p110, %p111
      %p114 = scmp.ne.s32.totalorder %s99, %s113
      %p115 = scmp.eq.s32.totalorder %s26, 0
      %p116 = por %p114, %p115
      %s117 = ssub.s32 %s27, %s39
      %p118 = scmp.eq.s32.totalorder %s117, 0
      %s120 = sadd.s32 %s119, 1
      %s121 = scalar_select %p118, %s119, %s120
      %p124 = pneg %p118
      %p125 = scmp.eq.s32.totalorder %s20, 1
      %p126 = por %p124, %p125
      %p127 = scmp.ne.s32.totalorder %s119, %s122
      %p128 = scmp.eq.s32.totalorder %s20, 0
      %p129 = por %p127, %p128
      %p130 = scmp.ne.s32.totalorder %s119, %s122
      %p131 = scmp.eq.s32.totalorder %s25, 1
      %p132 = por %p130, %p131
      %p133 = scmp.ne.s32.totalorder %s122, %s123
      %p134 = scmp.eq.s32.totalorder %s25, 0
      %p135 = por %p133, %p134
      %p136 = scmp.ne.s32.totalorder %s122, %s123
      %p137 = scmp.eq.s32.totalorder %s26, 1
      %p138 = por %p136, %p137
      %p140 = scmp.ne.s32.totalorder %s123, %s139
      %p141 = scmp.eq.s32.totalorder %s26, 0
      %p142 = por %p140, %p141
      %s143 = ssub.s32 %s27, %s39
      %p144 = scmp.eq.s32.totalorder %s143, 0
      %s146 = sadd.s32 %s145, 1
      %s147 = scalar_select %p144, %s145, %s146
      %p150 = pneg %p144
      %p151 = scmp.eq.s32.totalorder %s20, 1
      %p152 = por %p150, %p151
      %p153 = scmp.ne.s32.totalorder %s145, %s148
      %p154 = scmp.eq.s32.totalorder %s20, 0
      %p155 = por %p153, %p154
      %p156 = scmp.ne.s32.totalorder %s145, %s148
      %p157 = scmp.eq.s32.totalorder %s25, 1
      %p158 = por %p156, %p157
      %p159 = scmp.ne.s32.totalorder %s148, %s149
      %p160 = scmp.eq.s32.totalorder %s25, 0
      %p161 = por %p159, %p160
      %p162 = scmp.ne.s32.totalorder %s148, %s149
      %p163 = scmp.eq.s32.totalorder %s26, 1
      %p164 = por %p162, %p163
      %p166 = scmp.ne.s32.totalorder %s149, %s165
      %p167 = scmp.eq.s32.totalorder %s26, 0
      %p168 = por %p166, %p167
      %p169 = scmp.le.s32.totalorder 1, %s20
      %p170 = scmp.lt.s32.totalorder %s20, 3
      %p171 = pnand %p169, %p170
      %p172 = pneg %p171
      // Predicated region
      $region9: #{tpu_custom_call.1} parent=5 // pred_check
        _
      $region10: #{tpu_custom_call.1} parent=5 // pred_check_branch
        %174 = sbr.rel (%p171) target = $region12
      $region11: #{tpu_custom_call.1} parent=5 // pred_region
        %s175 = ssub.s32 %s20, 1
        // Predicated region
        $region13: #{tpu_custom_call.1} parent=11 // pred_check
          %p176 = pneg %p109
        $region14: #{tpu_custom_call.1} parent=11 // pred_check_branch
          %178 = sbr.rel (%p176) target = $region16
        $region15: #{tpu_custom_call.1} parent=11 // pred_region
          _
        $region16: #{tpu_custom_call.1} parent=11 // pred_fallthru
          _
      $region12: #{tpu_custom_call.1} parent=5 // pred_fallthru
        _
      %p179 = scmp.lt.s32.totalorder %s20, 2
      // Predicated region
      $region17: #{tpu_custom_call.1} parent=5 // pred_check
        %p180 = pneg %p179
      $region18: #{tpu_custom_call.1} parent=5 // pred_check_branch
        %182 = sbr.rel (%p180) target = $region20
      $region19: #{tpu_custom_call.1} parent=5 // pred_region
        // Predicated region
        $region21: #{tpu_custom_call.1} parent=19 // pred_check
          %p183 = pneg %p54
        $region22: #{tpu_custom_call.1} parent=19 // pred_check_branch
          %185 = sbr.rel (%p183) target = $region24
        $region23: #{tpu_custom_call.1} parent=19 // pred_region
          %s186 = sand.u32 %s44, 1
          %s187 = scalar_lea.sflag [#allocation5], %s186
          %s188 = sand.u32 %s44, 1
          %s189 = smul.addr %s188, 8
          %s190 = scalar_lea.vmem [#allocation4], %s189
          %s191 = smul.u32 2, %s28
          %s193 = ssub.s32 128, 128
          %194 = vsyncadd %s187, %s193
          %s195 = smul.addr %s27, 2
          %s196 = sadd.s32 %s191, %s195
          %s197 = smul.addr %s196, 64
          %s198 = scalar_lea.hbm %s0, %s197
          %s200 = sshll.u32 %s190, 4
          %s201 = int_to_ptr.vmem [resolvable:$true] %s200
          %203 = dma.hbm_to_vmem [thread:$0]  %s198, 128, %s201, %s187
        $region24: #{tpu_custom_call.1} parent=19 // pred_fallthru
          _
        // Predicated region
        $region25: #{tpu_custom_call.1} parent=19 // pred_check
          %p204 = pneg %p82
        $region26: #{tpu_custom_call.1} parent=19 // pred_check_branch
          %206 = sbr.rel (%p204) target = $region28
        $region27: #{tpu_custom_call.1} parent=19 // pred_region
          %s207 = smul.u32 2, %s28
          %p208 = scmp.lt.s32.totalorder %s27, 1
          %s209 = scalar_select %p208, %s27, 1
          %p210 = scmp.lt.s32.totalorder %s207, 1
          %s211 = scalar_select %p210, %s207, 1
          %s212 = smul.addr %s209, 2
          %s213 = sadd.s32 %s211, %s212
          %s214 = scalar_lea.vmem %s1, %s213
          %s215 = smul.u32 2, %s28
        $region28: #{tpu_custom_call.1} parent=19 // pred_fallthru
          _
      $region20: #{tpu_custom_call.1} parent=5 // pred_fallthru
        _
      %p216 = scmp.le.s32.totalorder 1, %s20
      %p217 = scmp.lt.s32.totalorder %s20, 3
      %p218 = pnand %p216, %p217
      %p219 = pneg %p218
      // Predicated region
      $region29: #{tpu_custom_call.1} parent=5 // pred_check
        _
      $region30: #{tpu_custom_call.1} parent=5 // pred_check_branch
        %221 = sbr.rel (%p218) target = $region32
      $region31: #{tpu_custom_call.1} parent=5 // pred_region
        %s222 = ssub.s32 %s20, 1
        %s223 = sand.u32 %s47, 1
        %s224 = scalar_lea.sflag [#allocation5], %s223
        %s225 = sand.u32 %s47, 1
        %s226 = smul.addr %s225, 8
        %s227 = scalar_lea.vmem [#allocation4], %s226
        // Predicated region
        $region33: #{tpu_custom_call.1} parent=31 // pred_check
          %p228 = pneg %p60
        $region34: #{tpu_custom_call.1} parent=31 // pred_check_branch
          %230 = sbr.rel (%p228) target = $region36
        $region35: #{tpu_custom_call.1} parent=31 // pred_region
          %231 = dma.done %s224, 128
        $region36: #{tpu_custom_call.1} parent=31 // pred_fallthru
          _
        %s232 = sand.u32 %s47, 1
        %s233 = scalar_lea.sflag [#allocation5], %s232
        %s234 = sand.u32 %s47, 1
        %s235 = smul.addr %s234, 8
        %s236 = scalar_lea.vmem [#allocation4], %s235
        %p237 = pneg %p60
        %p238 = pneg %p57
        %s239 = smul.u32 2, %s30
        %p240 = scmp.lt.s32.totalorder %s29, 1
        %s241 = scalar_select %p240, %s29, 1
        %p242 = scmp.lt.s32.totalorder %s239, 1
        %s243 = scalar_select %p242, %s239, 1
        %s244 = smul.addr %s241, 2
        %s245 = sadd.s32 %s243, %s244
        %s246 = scalar_lea.vmem %s1, %s245
        %p247 = pneg %p88
        %p248 = pneg %p85
        %p249 = pneg %p109
        %p250 = pneg %p106
        %p251 = pneg %p135
        %p252 = pneg %p132
        %s253 = sand.u32 %s122, 1
        %s254 = scalar_lea.sflag [#allocation6], %s253
        %s255 = sand.u32 %s122, 1
        %s256 = smul.addr %s255, 2
        %s257 = scalar_lea.vmem [#allocation7], %s256
        %p258 = pneg %p161
        %p259 = pneg %p158
        %s260 = sand.u32 %s148, 1
        %s261 = scalar_lea.sflag [#allocation9], %s260
        %s262 = sand.u32 %s148, 1
        %s263 = smul.addr %s262, 2
        %s264 = scalar_lea.vmem [#allocation8], %s263
        %s265 = smul.u32 2, %s30
        %s266 = smul.u32 2, %s30
        %p267 = scmp.lt.s32.totalorder %s29, 1
        %s268 = scalar_select %p267, %s29, 1
        %p269 = scmp.lt.s32.totalorder %s266, 1
        %s270 = scalar_select %p269, %s266, 1
        %s271 = smul.addr %s268, 2
        %s272 = sadd.s32 %s270, %s271
        %s273 = scalar_lea.vmem %s1, %s272
        %s274 = smul.u32 2, %s30
        %p275 = scmp.eq.s32.totalorder %s30, 0
        // Predicated region
        $region37: #{tpu_custom_call.1} parent=31 // pred_check
          %p276 = pneg %p275
        $region38: #{tpu_custom_call.1} parent=31 // pred_check_branch
          %278 = sbr.rel (%p276) target = $region40
        $region39: #{tpu_custom_call.1} parent=31 // pred_region
          %v279 = vlaneseq
          %vm280 = vcmp.ge.s32.totalorder %v279, 0
          %vm281 = vcmp.lt.s32.totalorder %v279, 256
          %vm282 = vmand %vm280, %vm281
          %283 = vst.msk [vmem:[#allocation2] sm:$0x3] %vm282, 0.0
          %284 = vst.msk [vmem:[#allocation3] sm:$0x3] %vm282, 0.0
        $region40: #{tpu_custom_call.1} parent=31 // pred_fallthru
          _
        %v285 = vld [vmem:[%s227] sm:$0xff]
        %v286 = vld [vmem:[%s273] sm:$0x3]
        %vm287 = vcmp.ne.s32.totalorder %v286, 4294967196
        %v288 = vsel %vm287, %v286, 0
        %v290 = vcombine.high %v285, %v285
        %vm292 = vcmask 1043456
        %v293 = vsel %vm292, %v285, -inf
        %v294 = vrot.slane %v293, 4
        %v295 = vmax.f32 %v293, %v294
        %v296 = vrot.slane %v295, 2
        %v297 = vmax.f32 %v295, %v296
        %v298 = vrot.slane %v297, 1
        %v299 = vmax.f32 %v297, %v298
        %v300 = vsel %vm292, %v290, -inf
        %v301 = vrot.slane %v300, 4
        %v302 = vmax.f32 %v300, %v301
        %v303 = vrot.slane %v302, 2
        %v304 = vmax.f32 %v302, %v303
        %v305 = vrot.slane %v304, 1
        %v306 = vmax.f32 %v304, %v305
        %v309 = vcombine.low %v299, %v306
        %v311 = vsub.f32 %v285, %v309
        %v312 = vmul.f32 %v311, 1.442695
        %v313 = vpow.pop %v312
        %v315 = vcombine.high %v313, %v313
        %v317 = vsel %vm292, %v313, 0.0
        %v318 = vrot.slane %v317, 4
        %v319 = vadd.f32 %v317, %v318
        %v320 = vrot.slane %v319, 2
        %v321 = vadd.f32 %v319, %v320
        %v322 = vrot.slane %v321, 1
        %v323 = vadd.f32 %v321, %v322
        %v324 = vsel %vm292, %v315, 0.0
        %v325 = vrot.slane %v324, 4
        %v326 = vadd.f32 %v324, %v325
        %v327 = vrot.slane %v326, 2
        %v328 = vadd.f32 %v326, %v327
        %v329 = vrot.slane %v328, 1
        %v330 = vadd.f32 %v328, %v329
        %v331 = vlog2.pop %v323
        %v332 = vmul.f32 %v331, 0.6931472
        %v333 = vlog2.pop %v330
        %v334 = vmul.f32 %v333, 0.6931472
        %v337 = vcombine.low %v332, %v334
        %v339 = vsub.f32 %v311, %v337
        %v340 = vlaneseq
        %v341 = vshrl.u32 %v340, 7
        %v342 = vlaneseq
        %v343 = vshrl.u32 %v342, 7
        %v344 = vsub.s32 0, %v343
        %v345 = vrot.slane %v288, %v344
        %v346 = vlaneseq
        %v347 = vshrl.u32 %v346, 7
        %v348 = vsub.s32 1, %v347
        %v349 = vrot.slane %v288, %v348
        %vm350 = vcmp.eq.s32.totalorder %v341, %v345
        %vm351 = vcmp.eq.s32.totalorder %v341, %v349
        %v352 = vsel %vm350, 1, 0
        %v353 = vsel %vm351, 1, 0
        %v354 = vcvt.s32.f32 %v352
        %v355 = vcvt.s32.f32 %v353
        %v358 = vcombine.low %v354, %v355
        %v360 = vmul.f32 %v339, %v358
        %v362 = vcombine.high %v360, %v360
        %v364 = vsel %vm292, %v360, 0.0
        %v365 = vrot.slane %v364, 4
        %v366 = vadd.f32 %v364, %v365
        %v367 = vrot.slane %v366, 2
        %v368 = vadd.f32 %v366, %v367
        %v369 = vrot.slane %v368, 1
        %v370 = vadd.f32 %v368, %v369
        %v371 = vsel %vm292, %v362, 0.0
        %v372 = vrot.slane %v371, 4
        %v373 = vadd.f32 %v371, %v372
        %v374 = vrot.slane %v373, 2
        %v375 = vadd.f32 %v373, %v374
        %v376 = vrot.slane %v375, 1
        %v377 = vadd.f32 %v375, %v376
        %v378 = vld [vmem:[%s2] sm:$0xf]
        %380 = vset.pattern.permute.xlu0 0
        %381 = vperm.xlu0 %380, %v378
        %v382 = vpop.permute.xlu0 %381
        %v384 = vmul.f32 %v382, %v354
        %v385 = vmul.f32 %v382, %v355
        %v386 = vsel %vm292, %v384, 0.0
        %v387 = vrot.slane %v386, 4
        %v388 = vadd.f32 %v386, %v387
        %v389 = vrot.slane %v388, 2
        %v390 = vadd.f32 %v388, %v389
        %v391 = vrot.slane %v390, 1
        %v392 = vadd.f32 %v390, %v391
        %v393 = vsel %vm292, %v385, 0.0
        %v394 = vrot.slane %v393, 4
        %v395 = vadd.f32 %v393, %v394
        %v396 = vrot.slane %v395, 2
        %v397 = vadd.f32 %v395, %v396
        %v398 = vrot.slane %v397, 1
        %v399 = vadd.f32 %v397, %v398
        %v400 = vsub.f32 0.0, %v392
        %v401 = vsub.f32 0.0, %v399
        %v402 = vmul.f32 %v400, %v370
        %v403 = vmul.f32 %v401, %v377
        %v404 = vmul.f32 %v370, 1.442695
        %v405 = vpow.pop %v404
        %v406 = vmul.f32 %v377, 1.442695
        %v407 = vpow.pop %v406
        %v408 = vsub.f32 1.0, %v405
        %v409 = vsub.f32 1.0, %v407
        %v410 = vmul.f32 %v408, %v408
        %v411 = vmul.f32 %v409, %v409
        %v412 = vld [vmem:[#allocation2] sm:$0x3]
        %v413 = vmul.f32 %v410, %v402
        %v414 = vmul.f32 %v411, %v403
        %v417 = vcombine.low %v413, %v414
        %v419 = vunpack.c.l.s4 1966171168
        %v420 = vunpack.c.0.s8 %v419
        %v421 = vlaneseq
        %v422 = vshrl.u32 %v421, 7
        %v423 = vsub.s32 %v420, %v422
        %v424 = vrot.slane %v417, %v423
        %v426 = vunpack.c.l.s4 1966171168
        %v427 = vunpack.c.0.s8 %v426
        %v428 = vlaneseq
        %v429 = vshrl.u32 %v428, 7
        %v430 = vsub.s32 %v427, %v429
        %v431 = vrot.slane %v424, %v430
        %v433 = vsel %vm287, %v431, 0.0
        %v434 = vadd.f32 %v412, %v433
        %v435 = vlaneseq
        %vm436 = vcmp.ge.s32.totalorder %v435, 0
        %vm437 = vcmp.lt.s32.totalorder %v435, 256
        %vm438 = vmand %vm436, %vm437
        %439 = vst.msk [vmem:[#allocation2] sm:$0x3] %vm438, %v434
        %v440 = vld [vmem:[#allocation3] sm:$0x3]
        %v441 = vsel %vm287, 1, 0
        %v442 = vcvt.s32.f32 %v441
        %v443 = vadd.f32 %v440, %v442
        %444 = vst.msk [vmem:[#allocation3] sm:$0x3] %vm438, %v443
        // Predicated region
        $region41: #{tpu_custom_call.1} parent=31 // pred_check
          %p445 = pneg %p275
        $region42: #{tpu_custom_call.1} parent=31 // pred_check_branch
          %447 = sbr.rel (%p445) target = $region44
        $region43: #{tpu_custom_call.1} parent=31 // pred_region
          %v448 = vld [vmem:[#allocation2] sm:$0x3]
          %449 = vst.msk [vmem:[%s257] sm:$0x3] %vm438, %v448
          %v450 = vld [vmem:[#allocation3] sm:$0x3]
          %451 = vst.msk [vmem:[%s264] sm:$0x3] %vm438, %v450
        $region44: #{tpu_custom_call.1} parent=31 // pred_fallthru
          _
        %s452 = sand.u32 %s122, 1
        %s453 = scalar_lea.sflag [#allocation6], %s452
        %s454 = sand.u32 %s122, 1
        %s455 = smul.addr %s454, 2
        %s456 = scalar_lea.vmem [#allocation7], %s455
        %s457 = sand.u32 %s148, 1
        %s458 = scalar_lea.sflag [#allocation9], %s457
        %s459 = sand.u32 %s148, 1
        %s460 = smul.addr %s459, 2
        %s461 = scalar_lea.vmem [#allocation8], %s460
        // Predicated region
        $region45: #{tpu_custom_call.1} parent=31 // pred_check
          %p462 = pneg %p132
        $region46: #{tpu_custom_call.1} parent=31 // pred_check_branch
          %464 = sbr.rel (%p462) target = $region48
        $region47: #{tpu_custom_call.1} parent=31 // pred_region
          %s466 = ssub.s32 32, 32
          %467 = vsyncadd %s453, %s466
          %s468 = smul.addr %s29, 2
          %s469 = smul.addr %s468, 16
          %s470 = scalar_lea.hbm %s3, %s469
          %s472 = sshll.u32 %s456, 4
          %s473 = int_to_ptr.vmem [resolvable:$true] %s472
          %475 = dma.vmem_to_hbm [thread:$0]  %s473, 32, %s470, %s453
        $region48: #{tpu_custom_call.1} parent=31 // pred_fallthru
          _
        // Predicated region
        $region49: #{tpu_custom_call.1} parent=31 // pred_check
          %p476 = pneg %p158
        $region50: #{tpu_custom_call.1} parent=31 // pred_check_branch
          %478 = sbr.rel (%p476) target = $region52
        $region51: #{tpu_custom_call.1} parent=31 // pred_region
          %s480 = ssub.s32 32, 32
          %481 = vsyncadd %s458, %s480
          %s482 = smul.addr %s29, 2
          %s483 = smul.addr %s482, 16
          %s484 = scalar_lea.hbm %s4, %s483
          %s486 = sshll.u32 %s461, 4
          %s487 = int_to_ptr.vmem [resolvable:$true] %s486
          %489 = dma.vmem_to_hbm [thread:$0]  %s487, 32, %s484, %s458
        $region52: #{tpu_custom_call.1} parent=31 // pred_fallthru
          _
      $region32: #{tpu_custom_call.1} parent=5 // pred_fallthru
        _
      %p490 = scmp.le.s32.totalorder 2, %s20
      // Predicated region
      $region53: #{tpu_custom_call.1} parent=5 // pred_check
        %p491 = pneg %p490
      $region54: #{tpu_custom_call.1} parent=5 // pred_check_branch
        %493 = sbr.rel (%p491) target = $region56
      $region55: #{tpu_custom_call.1} parent=5 // pred_region
        %s494 = ssub.s32 %s20, 2
        // Predicated region
        $region57: #{tpu_custom_call.1} parent=55 // pred_check
          %p495 = pneg %p138
        $region58: #{tpu_custom_call.1} parent=55 // pred_check_branch
          %497 = sbr.rel (%p495) target = $region60
        $region59: #{tpu_custom_call.1} parent=55 // pred_region
          %s498 = sand.u32 %s123, 1
          %s499 = scalar_lea.sflag [#allocation6], %s498
          %s500 = sand.u32 %s123, 1
          %s501 = smul.addr %s500, 2
          %s502 = scalar_lea.vmem [#allocation7], %s501
          %503 = dma.done %s499, 32
        $region60: #{tpu_custom_call.1} parent=55 // pred_fallthru
          _
        // Predicated region
        $region61: #{tpu_custom_call.1} parent=55 // pred_check
          %p504 = pneg %p164
        $region62: #{tpu_custom_call.1} parent=55 // pred_check_branch
          %506 = sbr.rel (%p504) target = $region64
        $region63: #{tpu_custom_call.1} parent=55 // pred_region
          %s507 = sand.u32 %s149, 1
          %s508 = scalar_lea.sflag [#allocation9], %s507
          %s509 = sand.u32 %s149, 1
          %s510 = smul.addr %s509, 2
          %s511 = scalar_lea.vmem [#allocation8], %s510
          %512 = dma.done %s508, 32
        $region64: #{tpu_custom_call.1} parent=55 // pred_fallthru
          _
      $region56: #{tpu_custom_call.1} parent=5 // pred_fallthru
        _
    $region6: #{tpu_custom_call.1} parent=1 // loop_footer
      %s24 = sadd.s32 1, %s20
    $region7: #{tpu_custom_call.1} parent=1 // loop_footer_branch
      %19 = sbr.rel target = $region3
    $region8: #{tpu_custom_call.1} parent=1 // loop_exit
      _
    %513 = vsyncpa [#allocation5], 1
    %s514 = scalar_lea.sflag [#allocation5], 1
    %515 = vsyncpa %s514, 1
    %516 = vsyncpa [#allocation6], 1
    %s517 = scalar_lea.sflag [#allocation6], 1
    %518 = vsyncpa %s517, 1
    %519 = vsyncpa [#allocation9], 1
    %s520 = scalar_lea.sflag [#allocation9], 1
    %521 = vsyncpa %s520, 1

</llo_original>
